<compile_context>
chip_gen: v7x
topology: tpu7x:2x2x1
jax: 0.10.0
libtpu: 0.0.40
codegen_flags: <defaults>
</compile_context>

<pallas_src>
import functools
import math

import jax
import jax.numpy as jnp
from jax import lax
from jax.experimental import pallas as pl
from jax.experimental.pallas import tpu as pltpu


def _convx_kernel(x_ref, b_ref, shift_ref, o_ref, xp_ref, *, H, W, KH, pad, act):
    """One batch element per grid step.

    x_ref     : (1, H, W*Cin)         unpadded input rows, W and Cin flattened on lanes
    b_ref     : (KH, Wp*Cin, W*Cout)  banded conv weights (BN scale pre-folded)
    shift_ref : (1, W*Cout)           BN shift tiled along W (lane-dense bias row)
    o_ref     : (1, H, W*Cout)        lane-dense output rows
    xp_ref    : (Hp, Wp*Cin) VMEM     zero-padded halo scratch
    """
    cin = x_ref.shape[-1] // W
    wcout = o_ref.shape[-1]

    # --- in-kernel zero padding: zero the halo scratch, copy the image into its interior ---
    xp_ref[...] = jnp.zeros(xp_ref.shape, xp_ref.dtype)
    xp_ref[pad:pad + H, pad * cin:(pad + W) * cin] = x_ref[0]

    # --- conv as KH accumulated MXU matmuls against banded (Toeplitz) weights --------------
    acc = jnp.zeros((H, wcout), jnp.float32)
    for kh in range(KH):
        a_kh = xp_ref[kh:kh + H, :]                       # (H, Wp*Cin): row-shifted rows
        acc = acc + jnp.dot(a_kh, b_ref[kh],
                            preferred_element_type=jnp.float32)

    # --- fused BN shift + activation, lane-dense store --------------------------------------
    y = acc + shift_ref[0]
    if act == "leaky":
        y = jnp.where(y > 0, y, 0.01 * y)                 # F.leaky_relu default slope
    else:
        y = jnp.maximum(y, 0.0)
    o_ref[0] = y.astype(o_ref.dtype)


def convx_forward(x_nchw, w_oihw, gamma, beta, running_mean, running_var,
                  *, eps=1e-5, act="relu"):
    """x_nchw: (N, Cin, H, W) f32; w_oihw: (Cout, Cin, KH, KW). Returns (N, Cout, H, W)."""
    N, Cin, H, W = x_nchw.shape
    Cout, _, KH, KW = w_oihw.shape
    assert KH == KW and KH % 2 == 1, "odd square kernels only (PyTorch padding=k//2)"
    pad = KH // 2
    Hp, Wp = H + 2 * pad, W + 2 * pad

    # ---- host-side glue: layout, BN folding, banded-weight construction -------------------
    x = jnp.transpose(x_nchw, (0, 2, 3, 1)).reshape(N, H, W * Cin)     # NHWC, lanes = W*Cin

    scale = gamma * lax.rsqrt(running_var + eps)                       # gamma / sqrt(var+eps)
    shift = beta - running_mean * scale
    wf = jnp.transpose(w_oihw, (2, 3, 1, 0)) * scale                   # (KH, KW, Cin, Cout)

    # band[kh, wp*Cin+ci, w*Cout+co] = wf[kh, wp-w, ci, co] for 0 <= wp-w < KW, else 0.
    sel = (jnp.arange(Wp)[None, :, None]
           == jnp.arange(W)[None, None, :] + jnp.arange(KW)[:, None, None])
    band = jnp.einsum("kpw,hkio->hpiwo", sel.astype(wf.dtype), wf)
    band = band.reshape(KH, Wp * Cin, W * Cout)

    shift_row = jnp.tile(shift, W).reshape(1, W * Cout)                # lane-dense bias row

    kernel = functools.partial(_convx_kernel, H=H, W=W, KH=KH, pad=pad, act=act)

    out = pl.pallas_call(
        kernel,
        out_shape=jax.ShapeDtypeStruct((N, H, W * Cout), jnp.float32),
        grid_spec=pltpu.PrefetchScalarGridSpec(
            num_scalar_prefetch=0,
            grid=(N,),
            in_specs=[
                pl.BlockSpec((1, H, W * Cin), lambda n: (n, 0, 0)),
                pl.BlockSpec((KH, Wp * Cin, W * Cout), lambda n: (0, 0, 0)),
                pl.BlockSpec((1, W * Cout), lambda n: (0, 0)),
            ],
            out_specs=pl.BlockSpec((1, H, W * Cout), lambda n: (n, 0, 0)),
            scratch_shapes=[pltpu.VMEM((Hp, Wp * Cin), jnp.float32)],
        ),
        compiler_params=pltpu.CompilerParams(
            dimension_semantics=("parallel",)),
    )(x, band, shift_row)

    out = out.reshape(N, H, W, Cout)
    return jnp.transpose(out, (0, 3, 1, 2))                            # back to NCHW


def _reference(x_nchw, w_oihw, gamma, beta, running_mean, running_var,
               *, eps=1e-5, act="relu"):
    """Pure-JAX reference (conv -> eval BN -> relu/leaky) for correctness check."""
    y = lax.conv_general_dilated(
        x_nchw, w_oihw, window_strides=(1, 1), padding="SAME",
        dimension_numbers=("NCHW", "OIHW", "NCHW"))
    scale = gamma / jnp.sqrt(running_var + eps)
    shift = beta - running_mean * scale
    y = y * scale[None, :, None, None] + shift[None, :, None, None]
    if act == "leaky":
        return jnp.where(y > 0, y, 0.01 * y)
    return jnp.maximum(y, 0.0)


if __name__ == "__main__":
    # Small shapes consistent with ConvX(in_channel=4, out_channel=8, kernel_size=3)
    N, Cin, H, W = 2, 4, 16, 16
    Cout, K = 8, 3

    key = jax.random.PRNGKey(0)
    kx, kw, kg, kb, km, kv = jax.random.split(key, 6)

    x = jax.random.normal(kx, (N, Cin, H, W), dtype=jnp.float32)

    # Conv2d default init: uniform(-1/sqrt(fan_in), 1/sqrt(fan_in)); bias=False.
    fan_in = Cin * K * K
    bound = 1.0 / math.sqrt(fan_in)
    w = jax.random.uniform(kw, (Cout, Cin, K, K), dtype=jnp.float32,
                           minval=-bound, maxval=bound)

    # BatchNorm2d affine params + running stats, made non-trivial so the fused
    # scale-into-weights / shift-as-bias path is actually exercised.
    gamma = 1.0 + 0.1 * jax.random.normal(kg, (Cout,), dtype=jnp.float32)
    beta = 0.1 * jax.random.normal(kb, (Cout,), dtype=jnp.float32)
    running_mean = 0.1 * jax.random.normal(km, (Cout,), dtype=jnp.float32)
    running_var = 1.0 + 0.1 * jax.random.uniform(kv, (Cout,), dtype=jnp.float32)

    for act in ("relu", "leaky"):
        out = jax.block_until_ready(
            convx_forward(x, w, gamma, beta, running_mean, running_var, act=act))
        ref = _reference(x, w, gamma, beta, running_mean, running_var, act=act)
        assert out.shape == (N, Cout, H, W)
        assert jnp.allclose(out, ref, atol=1e-4, rtol=1e-4), f"mismatch vs reference ({act})"

    print("KERNEL_OK")
</pallas_src>

<mosaic_0001>
module attributes {stable_mosaic.version = 11 : i64} {
  func.func @_convx_kernel(%arg0: i32, %arg1: memref<1x16x64xf32, #tpu.memory_space<vmem>>, %arg2: memref<3x72x128xf32, #tpu.memory_space<vmem>>, %arg3: memref<1x128xf32, #tpu.memory_space<vmem>>, %arg4: memref<1x16x128xf32, #tpu.memory_space<vmem>>, %arg5: memref<18x72xf32, #tpu.memory_space<vmem>>) attributes {dimension_semantics = [#tpu.dimension_semantics<parallel>], iteration_bounds = array<i64: 2>, scalar_prefetch = 0 : i64, scratch_operands = 1 : i64, tpu.core_type = #tpu.core_type<tc>, window_params = [{transform_indices = @transform_0, window_bounds = array<i64: 1, 16, 64>}, {pipeline_mode = #tpu.pipeline_mode<synchronous>, transform_indices = @transform_1, window_bounds = array<i64: 3, 72, 128>}, {pipeline_mode = #tpu.pipeline_mode<synchronous>, transform_indices = @transform_2, window_bounds = array<i64: 1, 128>}, {transform_indices = @transform_3, window_bounds = array<i64: 1, 16, 128>}]} {
    %cst = arith.constant 0.000000e+00 : f32
    %0 = vector.broadcast %cst : f32 to vector<18x72xf32>
    %c0 = arith.constant 0 : index
    %c0_0 = arith.constant 0 : index
    %1 = vector.load %arg5[%c0, %c0_0] : memref<18x72xf32, #tpu.memory_space<vmem>>, vector<18x72xf32>
    tpu.vector_store %arg5[%c0, %c0_0], %0 {strides = array<i32>} : memref<18x72xf32, #tpu.memory_space<vmem>>, vector<18x72xf32>,
    %c0_1 = arith.constant 0 : index
    %c0_2 = arith.constant 0 : index
    %c0_3 = arith.constant 0 : index
    %2 = vector.load %arg1[%c0_1, %c0_2, %c0_3] : memref<1x16x64xf32, #tpu.memory_space<vmem>>, vector<1x16x64xf32>
    %3 = vector.shape_cast %2 : vector<1x16x64xf32> to vector<16x64xf32>
    %c1 = arith.constant 1 : index
    %c4 = arith.constant 4 : index
    %4 = vector.load %arg5[%c1, %c4] : memref<18x72xf32, #tpu.memory_space<vmem>>, vector<16x64xf32>
    tpu.vector_store %arg5[%c1, %c4], %3 {strides = array<i32>} : memref<18x72xf32, #tpu.memory_space<vmem>>, vector<16x64xf32>,
    %cst_4 = arith.constant 0.000000e+00 : f32
    %5 = vector.broadcast %cst_4 : f32 to vector<16x128xf32>
    %c0_5 = arith.constant 0 : index
    %c0_6 = arith.constant 0 : index
    %6 = vector.load %arg5[%c0_5, %c0_6] : memref<18x72xf32, #tpu.memory_space<vmem>>, vector<16x72xf32>
    %c0_7 = arith.constant 0 : index
    %c0_8 = arith.constant 0 : index
    %c0_9 = arith.constant 0 : index
    %7 = vector.load %arg2[%c0_7, %c0_8, %c0_9] : memref<3x72x128xf32, #tpu.memory_space<vmem>>, vector<1x72x128xf32>
    %8 = vector.shape_cast %7 : vector<1x72x128xf32> to vector<72x128xf32>
    %cst_10 = arith.constant dense<0.000000e+00> : vector<16x128xf32>
    %9 = tpu.matmul %6, %8, %cst_10 {dimension_numbers = #tpu.dot_dimension_numbers<[1], [0], [0], [1], [0, 0, 1, 1], [], []>} : vector<16x72xf32>, vector<72x128xf32>, vector<16x128xf32> -> vector<16x128xf32>
    %10 = arith.addf %5, %9 : vector<16x128xf32>
    %c1_11 = arith.constant 1 : index
    %c0_12 = arith.constant 0 : index
    %11 = vector.load %arg5[%c1_11, %c0_12] : memref<18x72xf32, #tpu.memory_space<vmem>>, vector<16x72xf32>
    %c1_13 = arith.constant 1 : index
    %c0_14 = arith.constant 0 : index
    %c0_15 = arith.constant 0 : index
    %12 = vector.load %arg2[%c1_13, %c0_14, %c0_15] : memref<3x72x128xf32, #tpu.memory_space<vmem>>, vector<1x72x128xf32>
    %13 = vector.shape_cast %12 : vector<1x72x128xf32> to vector<72x128xf32>
    %cst_16 = arith.constant dense<0.000000e+00> : vector<16x128xf32>
    %14 = tpu.matmul %11, %13, %cst_16 {dimension_numbers = #tpu.dot_dimension_numbers<[1], [0], [0], [1], [0, 0, 1, 1], [], []>} : vector<16x72xf32>, vector<72x128xf32>, vector<16x128xf32> -> vector<16x128xf32>
    %15 = arith.addf %10, %14 : vector<16x128xf32>
    %c2 = arith.constant 2 : index
    %c0_17 = arith.constant 0 : index
    %16 = vector.load %arg5[%c2, %c0_17] : memref<18x72xf32, #tpu.memory_space<vmem>>, vector<16x72xf32>
    %c2_18 = arith.constant 2 : index
    %c0_19 = arith.constant 0 : index
    %c0_20 = arith.constant 0 : index
    %17 = vector.load %arg2[%c2_18, %c0_19, %c0_20] : memref<3x72x128xf32, #tpu.memory_space<vmem>>, vector<1x72x128xf32>
    %18 = vector.shape_cast %17 : vector<1x72x128xf32> to vector<72x128xf32>
    %cst_21 = arith.constant dense<0.000000e+00> : vector<16x128xf32>
    %19 = tpu.matmul %16, %18, %cst_21 {dimension_numbers = #tpu.dot_dimension_numbers<[1], [0], [0], [1], [0, 0, 1, 1], [], []>} : vector<16x72xf32>, vector<72x128xf32>, vector<16x128xf32> -> vector<16x128xf32>
    %20 = arith.addf %15, %19 : vector<16x128xf32>
    %c0_22 = arith.constant 0 : index
    %c0_23 = arith.constant 0 : index
    %21 = vector.load %arg3[%c0_22, %c0_23] : memref<1x128xf32, #tpu.memory_space<vmem>>, vector<1x128xf32>
    %22 = vector.shape_cast %21 : vector<1x128xf32> to vector<128xf32>
    %23 = vector.shape_cast %22 : vector<128xf32> to vector<1x128xf32>
    %24 = vector.broadcast %23 : vector<1x128xf32> to vector<16x128xf32>
    %25 = arith.addf %20, %24 : vector<16x128xf32>
    %cst_24 = arith.constant 0.000000e+00 : f32
    %26 = vector.broadcast %cst_24 : f32 to vector<16x128xf32>
    %27 = arith.maximumf %25, %26 : vector<16x128xf32>
    %c0_25 = arith.constant 0 : index
    %c0_26 = arith.constant 0 : index
    %c0_27 = arith.constant 0 : index
    %28 = vector.load %arg4[%c0_25, %c0_26, %c0_27] : memref<1x16x128xf32, #tpu.memory_space<vmem>>, vector<1x16x128xf32>
    %29 = vector.shape_cast %28 : vector<1x16x128xf32> to vector<16x128xf32>
    %30 = vector.shape_cast %27 : vector<16x128xf32> to vector<1x16x128xf32>
    tpu.vector_store %arg4[%c0_25, %c0_26, %c0_27], %30 {strides = array<i32>} : memref<1x16x128xf32, #tpu.memory_space<vmem>>, vector<1x16x128xf32>,
    return
  }
  func.func @transform_0(%arg0: i32) -> (i32, i32, i32) {
    %c0_i32 = arith.constant 0 : i32
    %c0_i32_0 = arith.constant 0 : i32
    %c0_i32_1 = arith.constant 0 : i32
    return %arg0, %c0_i32, %c0_i32_0 : i32, i32, i32
  }
  func.func @transform_1(%arg0: i32) -> (i32, i32, i32) {
    %c0_i32 = arith.constant 0 : i32
    %c0_i32_0 = arith.constant 0 : i32
    %c0_i32_1 = arith.constant 0 : i32
    %c0_i32_2 = arith.constant 0 : i32
    return %c0_i32, %c0_i32_0, %c0_i32_1 : i32, i32, i32
  }
  func.func @transform_2(%arg0: i32) -> (i32, i32) {
    %c0_i32 = arith.constant 0 : i32
    %c0_i32_0 = arith.constant 0 : i32
    %c0_i32_1 = arith.constant 0 : i32
    return %c0_i32, %c0_i32_0 : i32, i32
  }
  func.func @transform_3(%arg0: i32) -> (i32, i32, i32) {
    %c0_i32 = arith.constant 0 : i32
    %c0_i32_0 = arith.constant 0 : i32
    %c0_i32_1 = arith.constant 0 : i32
    return %arg0, %c0_i32, %c0_i32_0 : i32, i32, i32
  }
}

</mosaic_0001>

<llo_original>
// kernel: tpu_custom_call.1
$region0: #{tpu_custom_call.1}
  #allocation0 [shape = 'u32[]', space=smem, size = 0x4, offset = 0x4, fixed_abs, tag = 'smem constant byte address 0x4 - core index']
  #allocation1 [shape = 'u32[144,128]{1,0:T(1,128)}', space=vmem, size = 0x12000, scoped, tag = 'internal scratch']
  #allocation2 [shape = 'f32[18,72]{1,0:T(8,128)}', space=vmem, size = 0x3000, scoped, tag = 'scratch operand']
  %s0 = inlined_call_operand.hbm [shape: f32[2,16,64], index: 0, kind: input, shape index: {}]
  %s1 = inlined_call_operand.hbm [shape: f32[3,72,128], index: 1, kind: input, shape index: {}]
  %s2 = inlined_call_operand.vmem [shape: f32[1,128], index: 2, kind: input, shape index: {}]
  %s3 = inlined_call_operand.hbm [shape: f32[2,16,128], index: 3, kind: output, shape index: {}]
  %s4 = sld [smem:[#allocation0]]
  $region53: #{tpu_custom_call.1} parent=0
    _
  %s6 = ssub.s32 1, %s4
  %s7 = scalar_select 0, %s6, %s4
  $region1: #{tpu_custom_call.1} parent=0
    #allocation3 [shape = 'u8[16384]{0}', space=vmem, size = 0x4000, scoped, tag = 'input window, operand 0']
    #allocation4 [shape = 's32[2]{0}', space=sflag, size = 0x8, scoped, tag = 'scoped memory for tpu_custom_call.1']
    #allocation5 [shape = 's32[2]{0}', space=sflag, size = 0x8, scoped, tag = 'scoped memory for tpu_custom_call.1']
    #allocation6 [shape = 'u8[110592]{0}', space=vmem, size = 0x1b000, scoped, tag = 'input window, operand 1, single buffered']
    #allocation7 [shape = 's32[1]{0}', space=sflag, size = 0x4, scoped, tag = 'scoped memory for tpu_custom_call.1']
    #allocation8 [shape = 'u8[16384]{0}', space=vmem, size = 0x4000, scoped, tag = 'output window, operand 0']
    %8 = vsyncpa [#allocation4], 0
    %s9 = scalar_lea.sflag [#allocation4], 1
    %10 = vsyncpa %s9, 0
    %11 = vsyncpa [#allocation7], 0
    %12 = vsyncpa [#allocation5], 0
    %s13 = scalar_lea.sflag [#allocation5], 1
    %14 = vsyncpa %s13, 0
    loop: start=0, step=1, limit=4
    $region2: #{tpu_custom_call.1} parent=1 // loop_pre_header
      _
    $region3: #{tpu_custom_call.1} parent=1 // loop_header
      %s16 = sphi 0, %s20
      %p17 = scmp.ge.s32.totalorder %s16, 4
      %s26 = sphi 0, %s28
      %s29 = sphi 0, %s26
      %s30 = sphi 0, %s29
      %s46 = sphi 0, %s30
      %s50 = sphi 0, %s50
      %s52 = sphi 0, %s50
      %s53 = sphi 0, %s52
      %s67 = sphi 0, %s53
      %s71 = sphi 0, %s71
      %s73 = sphi 0, %s71
      %s74 = sphi 0, %s73
      %s88 = sphi 0, %s74
      %s94 = sphi 0, %s96
      %s97 = sphi 0, %s94
      %s98 = sphi 0, %s97
      %s114 = sphi 0, %s98
    $region4: #{tpu_custom_call.1} parent=1 // loop_header_branch
      %19 = sbr.rel (%p17) target = $region8
    $region5: #{tpu_custom_call.1} parent=1 // loop_body
      %s21 = ssub.s32 %s16, 1
      %s22 = ssub.s32 %s16, 2
      %s23 = sadd.s32 %s16, 1
      %s24 = ssub.s32 %s16, %s23
      %p25 = scmp.eq.s32.totalorder %s24, 0
      %s27 = sadd.s32 %s26, 1
      %s28 = scalar_select %p25, %s26, %s27
      %p31 = pneg %p25
      %p32 = scmp.eq.s32.totalorder %s16, 1
      %p33 = por %p31, %p32
      %p34 = scmp.ne.s32.totalorder %s26, %s29
      %p35 = scmp.eq.s32.totalorder %s16, 0
      %p36 = por %p34, %p35
      %p37 = scmp.ne.s32.totalorder %s26, %s29
      %p38 = scmp.eq.s32.totalorder %s21, 1
      %p39 = por %p37, %p38
      %p40 = scmp.ne.s32.totalorder %s29, %s30
      %p41 = scmp.eq.s32.totalorder %s21, 0
      %p42 = por %p40, %p41
      %p43 = scmp.ne.s32.totalorder %s29, %s30
      %p44 = scmp.eq.s32.totalorder %s22, 1
      %p45 = por %p43, %p44
      %p47 = scmp.ne.s32.totalorder %s30, %s46
      %p48 = scmp.eq.s32.totalorder %s22, 0
      %p49 = por %p47, %p48
      %s51 = sadd.s32 %s50, 1
      %p54 = scmp.eq.s32.totalorder %s16, 1
      %p55 = scmp.ne.s32.totalorder %s50, %s52
      %p56 = scmp.eq.s32.totalorder %s16, 0
      %p57 = por %p55, %p56
      %p58 = scmp.ne.s32.totalorder %s50, %s52
      %p59 = scmp.eq.s32.totalorder %s21, 1
      %p60 = por %p58, %p59
      %p61 = scmp.ne.s32.totalorder %s52, %s53
      %p62 = scmp.eq.s32.totalorder %s21, 0
      %p63 = por %p61, %p62
      %p64 = scmp.ne.s32.totalorder %s52, %s53
      %p65 = scmp.eq.s32.totalorder %s22, 1
      %p66 = por %p64, %p65
      %p68 = scmp.ne.s32.totalorder %s53, %s67
      %p69 = scmp.eq.s32.totalorder %s22, 0
      %p70 = por %p68, %p69
      %s72 = sadd.s32 %s71, 1
      %p75 = scmp.eq.s32.totalorder %s16, 1
      %p76 = scmp.ne.s32.totalorder %s71, %s73
      %p77 = scmp.eq.s32.totalorder %s16, 0
      %p78 = por %p76, %p77
      %p79 = scmp.ne.s32.totalorder %s71, %s73
      %p80 = scmp.eq.s32.totalorder %s21, 1
      %p81 = por %p79, %p80
      %p82 = scmp.ne.s32.totalorder %s73, %s74
      %p83 = scmp.eq.s32.totalorder %s21, 0
      %p84 = por %p82, %p83
      %p85 = scmp.ne.s32.totalorder %s73, %s74
      %p86 = scmp.eq.s32.totalorder %s22, 1
      %p87 = por %p85, %p86
      %p89 = scmp.ne.s32.totalorder %s74, %s88
      %p90 = scmp.eq.s32.totalorder %s22, 0
      %p91 = por %p89, %p90
      %s92 = ssub.s32 %s16, %s23
      %p93 = scmp.eq.s32.totalorder %s92, 0
      %s95 = sadd.s32 %s94, 1
      %s96 = scalar_select %p93, %s94, %s95
      %p99 = pneg %p93
      %p100 = scmp.eq.s32.totalorder %s16, 1
      %p101 = por %p99, %p100
      %p102 = scmp.ne.s32.totalorder %s94, %s97
      %p103 = scmp.eq.s32.totalorder %s16, 0
      %p104 = por %p102, %p103
      %p105 = scmp.ne.s32.totalorder %s94, %s97
      %p106 = scmp.eq.s32.totalorder %s21, 1
      %p107 = por %p105, %p106
      %p108 = scmp.ne.s32.totalorder %s97, %s98
      %p109 = scmp.eq.s32.totalorder %s21, 0
      %p110 = por %p108, %p109
      %p111 = scmp.ne.s32.totalorder %s97, %s98
      %p112 = scmp.eq.s32.totalorder %s22, 1
      %p113 = por %p111, %p112
      %p115 = scmp.ne.s32.totalorder %s98, %s114
      %p116 = scmp.eq.s32.totalorder %s22, 0
      %p117 = por %p115, %p116
      %p118 = scmp.le.s32.totalorder 1, %s16
      %p119 = scmp.lt.s32.totalorder %s16, 3
      %p120 = pnand %p118, %p119
      %p121 = pneg %p120
      // Predicated region
      $region9: #{tpu_custom_call.1} parent=5 // pred_check
        _
      $region10: #{tpu_custom_call.1} parent=5 // pred_check_branch
        %123 = sbr.rel (%p120) target = $region12
      $region11: #{tpu_custom_call.1} parent=5 // pred_region
        %s124 = ssub.s32 %s16, 1
        // Predicated region
        $region13: #{tpu_custom_call.1} parent=11 // pred_check
          %p125 = pneg %p63
        $region14: #{tpu_custom_call.1} parent=11 // pred_check_branch
          %127 = sbr.rel (%p125) target = $region16
        $region15: #{tpu_custom_call.1} parent=11 // pred_region
          %s129 = ssub.s32 3456, 3456
          %130 = vsyncadd [#allocation7], %s129
          %s131 = sshll.u32 [#allocation6], 4
          %s132 = int_to_ptr.vmem [resolvable:$true] %s131
          %137 = dma.hbm_to_vmem [thread:$0]  %s1, 3456, %s132, [#allocation7], 128, 128, 8
        $region16: #{tpu_custom_call.1} parent=11 // pred_fallthru
          _
        // Predicated region
        $region17: #{tpu_custom_call.1} parent=11 // pred_check
          %p138 = pneg %p84
        $region18: #{tpu_custom_call.1} parent=11 // pred_check_branch
          %140 = sbr.rel (%p138) target = $region20
        $region19: #{tpu_custom_call.1} parent=11 // pred_region
          _
        $region20: #{tpu_custom_call.1} parent=11 // pred_fallthru
          _
      $region12: #{tpu_custom_call.1} parent=5 // pred_fallthru
        _
      %p141 = scmp.lt.s32.totalorder %s16, 2
      // Predicated region
      $region21: #{tpu_custom_call.1} parent=5 // pred_check
        %p142 = pneg %p141
      $region22: #{tpu_custom_call.1} parent=5 // pred_check_branch
        %144 = sbr.rel (%p142) target = $region24
      $region23: #{tpu_custom_call.1} parent=5 // pred_region
        // Predicated region
        $region25: #{tpu_custom_call.1} parent=23 // pred_check
          %p145 = pneg %p36
        $region26: #{tpu_custom_call.1} parent=23 // pred_check_branch
          %147 = sbr.rel (%p145) target = $region28
        $region27: #{tpu_custom_call.1} parent=23 // pred_region
          %s148 = sand.u32 %s26, 1
          %s149 = scalar_lea.sflag [#allocation4], %s148
          %s150 = sand.u32 %s26, 1
          %s151 = smul.addr %s150, 16
          %s152 = scalar_lea.vmem [#allocation3], %s151
          %s154 = ssub.s32 256, 256
          %155 = vsyncadd %s149, %s154
          %s156 = smul.addr %s16, 2
          %s157 = smul.addr %s156, 128
          %s158 = scalar_lea.hbm %s0, %s157
          %s159 = sshll.u32 %s152, 4
          %s160 = int_to_ptr.vmem [resolvable:$true] %s159
          %165 = dma.hbm_to_vmem [thread:$0]  %s158, 256, %s160, %s149, 128, 128, 8
        $region28: #{tpu_custom_call.1} parent=23 // pred_fallthru
          _
      $region24: #{tpu_custom_call.1} parent=5 // pred_fallthru
        _
      %p166 = scmp.le.s32.totalorder 1, %s16
      %p167 = scmp.lt.s32.totalorder %s16, 3
      %p168 = pnand %p166, %p167
      %p169 = pneg %p168
      // Predicated region
      $region29: #{tpu_custom_call.1} parent=5 // pred_check
        _
      $region30: #{tpu_custom_call.1} parent=5 // pred_check_branch
        %171 = sbr.rel (%p168) target = $region32
      $region31: #{tpu_custom_call.1} parent=5 // pred_region
        %s172 = ssub.s32 %s16, 1
        %s173 = sand.u32 %s29, 1
        %s174 = scalar_lea.sflag [#allocation4], %s173
        %s175 = sand.u32 %s29, 1
        %s176 = smul.addr %s175, 16
        %s177 = scalar_lea.vmem [#allocation3], %s176
        // Predicated region
        $region33: #{tpu_custom_call.1} parent=31 // pred_check
          %p178 = pneg %p42
        $region34: #{tpu_custom_call.1} parent=31 // pred_check_branch
          %180 = sbr.rel (%p178) target = $region36
        $region35: #{tpu_custom_call.1} parent=31 // pred_region
          %181 = dma.done %s174, 256
        $region36: #{tpu_custom_call.1} parent=31 // pred_fallthru
          _
        // Predicated region
        $region37: #{tpu_custom_call.1} parent=31 // pred_check
          %p182 = pneg %p63
        $region38: #{tpu_custom_call.1} parent=31 // pred_check_branch
          %184 = sbr.rel (%p182) target = $region40
        $region39: #{tpu_custom_call.1} parent=31 // pred_region
          %185 = dma.done [#allocation7], 3456
        $region40: #{tpu_custom_call.1} parent=31 // pred_fallthru
          _
        %s186 = sand.u32 %s29, 1
        %s187 = scalar_lea.sflag [#allocation4], %s186
        %s188 = sand.u32 %s29, 1
        %s189 = smul.addr %s188, 16
        %s190 = scalar_lea.vmem [#allocation3], %s189
        %p191 = pneg %p42
        %p192 = pneg %p39
        %p193 = pneg %p63
        %p194 = pneg %p60
        %p195 = pneg %p84
        %p196 = pneg %p81
        %p197 = pneg %p110
        %p198 = pneg %p107
        %s199 = sand.u32 %s97, 1
        %s200 = scalar_lea.sflag [#allocation5], %s199
        %s201 = sand.u32 %s97, 1
        %s202 = smul.addr %s201, 16
        %s203 = scalar_lea.vmem [#allocation8], %s202
        %vm204 = vcmask 588800
        %205 = vst.msk [vmem:[#allocation2] sm:$0xff] %vm204, 0.0
        %206 = vst.msk [vmem:[#allocation2 + $0x8] sm:$0xff] %vm204, 0.0
        %vm207 = vcmask 582656
        %208 = vst.msk [vmem:[#allocation2 + $0x10] sm:$0x3] %vm207, 0.0
        %v209 = vld [vmem:[%s177] sm:$0xff]
        %v210 = vld [vmem:[%s177 + $0x8] sm:$0xff]
        %213 = vrot.lane.b32.xlu0 %v209, 4
        %v214 = vpop.permute.xlu0 %213
        %215 = vrot.lane.b32.xlu0 %v210, 4
        %v216 = vpop.permute.xlu0 %215
        %vm219 = vcmask 556064
        %220 = vst.msk [vmem:[#allocation2 + $0x1] sm:$0xff] %vm219, %v214
        %221 = vst.msk [vmem:[#allocation2 + $0x9] sm:$0xff] %vm219, %v216
        %v222 = vld [vmem:[#allocation2] sm:$0xff]
        %v223 = vld [vmem:[#allocation2 + $0x8] sm:$0xff]
        %v224 = vld [vmem:[#allocation6] sm:$0xff]
        %v225 = vld [vmem:[#allocation6 + $0x8] sm:$0xff]
        %v226 = vld [vmem:[#allocation6 + $0x10] sm:$0xff]
        %v227 = vld [vmem:[#allocation6 + $0x18] sm:$0xff]
        %v228 = vld [vmem:[#allocation6 + $0x20] sm:$0xff]
        %v229 = vld [vmem:[#allocation6 + $0x28] sm:$0xff]
        %v230 = vld [vmem:[#allocation6 + $0x30] sm:$0xff]
        %v231 = vld [vmem:[#allocation6 + $0x38] sm:$0xff]
        %v232 = vld [vmem:[#allocation6 + $0x40] sm:$0xff]
        %v233 = vld [vmem:[#allocation2 + $0x1] sm:$0xff]
        %v234 = vld [vmem:[#allocation2 + $0x9] sm:$0xff]
        %s235 = scalar_lea.vmem [#allocation6], 72
        %v236 = vld [vmem:[%s235] sm:$0xff]
        %v237 = vld [vmem:[%s235 + $0x8] sm:$0xff]
        %v238 = vld [vmem:[%s235 + $0x10] sm:$0xff]
        %v239 = vld [vmem:[%s235 + $0x18] sm:$0xff]
        %v240 = vld [vmem:[%s235 + $0x20] sm:$0xff]
        %v241 = vld [vmem:[%s235 + $0x28] sm:$0xff]
        %v242 = vld [vmem:[%s235 + $0x30] sm:$0xff]
        %v243 = vld [vmem:[%s235 + $0x38] sm:$0xff]
        %v244 = vld [vmem:[%s235 + $0x40] sm:$0xff]
        %v246 = vsel %vm204, %v233, 0
        %v249 = vsel %vm204, %v234, 0
        %251 = vmatprep.subr.mxu0 0.0
        %252 = vmatpush1.msra.mxu0 %v236
        %253 = vmatprep.subr.mxu0 0.0
        %254 = vmatpush1.msra.mxu0 %v237
        %255 = vmatprep.subr.mxu0 0.0
        %256 = vmatpush1.msra.mxu0 %v238
        %257 = vmatprep.subr.mxu0 0.0
        %258 = vmatpush1.msra.mxu0 %v239
        %259 = vmatprep.subr.mxu0 0.0
        %260 = vmatpush1.msra.mxu0 %v240
        %261 = vmatprep.subr.mxu0 0.0
        %262 = vmatpush1.msra.mxu0 %v241
        %263 = vmatprep.subr.mxu0 0.0
        %264 = vmatpush1.msra.mxu0 %v242
        %265 = vmatprep.subr.mxu0 0.0
        %266 = vmatpush1.msra.mxu0 %v243
        %267 = vmatprep.subr.mxu0 0.0
        %268 = vmatpush1.msra.mxu0 %v244
        %269 = vmatprep.subr.mxu0 0.0
        %270 = vmatpush1.msra.mxu0 0.0
        %271 = vmatprep.subr.mxu0 0.0
        %272 = vmatpush1.msra.mxu0 0.0
        %273 = vmatprep.subr.mxu0 0.0
        %274 = vmatpush1.msra.mxu0 0.0
        %275 = vmatprep.subr.mxu0 0.0
        %276 = vmatpush1.msra.mxu0 0.0
        %277 = vmatprep.subr.mxu0 0.0
        %278 = vmatpush1.msra.mxu0 0.0
        %279 = vmatprep.subr.mxu0 0.0
        %280 = vmatpush1.msra.mxu0 0.0
        %281 = vmatprep.subr.mxu0 0.0
        %282 = vmatpush1.msra.mxu0 0.0
        %283 = vmatprep.subr.mxu0 0.0
        %284 = vmatpush1.msra.mxu0 0.0
        %285 = vmatprep.subr.mxu0 0.0
        %286 = vmatpush1.msra.mxu0 0.0
        %287 = vmatprep.subr.mxu0 0.0
        %288 = vmatpush1.msra.mxu0 0.0
        %289 = vmatprep.subr.mxu0 0.0
        %290 = vmatpush1.msra.mxu0 0.0
        %291 = vmatprep.subr.mxu0 0.0
        %292 = vmatpush1.msra.mxu0 0.0
        %293 = vmatprep.subr.mxu0 0.0
        %294 = vmatpush1.msra.mxu0 0.0
        %295 = vmatprep.subr.mxu0 0.0
        %296 = vmatpush1.msra.mxu0 0.0
        %297 = vmatprep.subr.mxu0 0.0
        %298 = vmatpush1.msra.mxu0 0.0
        %299 = vmatprep.subr.mxu0 0.0
        %300 = vmatpush1.msra.mxu0 0.0
        %301 = vmatprep.subr.mxu0 0.0
        %302 = vmatpush1.msra.mxu0 0.0
        %303 = vmatprep.subr.mxu0 0.0
        %304 = vmatpush1.msra.mxu0 0.0
        %305 = vmatprep.subr.mxu0 0.0
        %306 = vmatpush1.msra.mxu0 0.0
        %307 = vmatprep.subr.mxu0 0.0
        %308 = vmatpush1.msra.mxu0 0.0
        %309 = vmatprep.subr.mxu0 0.0
        %310 = vmatpush1.msra.mxu0 0.0
        %311 = vmatprep.subr.mxu0 0.0
        %312 = vmatpush1.msra.mxu0 0.0
        %313 = vmatprep.subr.mxu0 0.0
        %314 = vmatpush1.msra.mxu0 0.0
        %315 = vmatprep.mubr.f32.mxu0 0.0
        %316 = vmatmul.mubr.f32.gmra.mrb[0].mxu0 %v246
        %v317 = vpop.f32.mrb[0].mxu0
        %v318 = vadd.f32 0.0, %v317
        %v319 = vpop.f32.mrb[0].mxu0
        %320 = vmatprep.mubr.f32.mxu0 0.0
        %321 = vmatmul.mubr.f32.gmra.mrb[0].mxu0 %v249
        %v322 = vpop.f32.mrb[0].mxu0
        %v323 = vadd.f32 0.0, %v322
        %v324 = vpop.f32.mrb[0].mxu0
        %325 = vdwg.mxu0
        %v327 = vsel %vm204, %v222, 0
        %v330 = vsel %vm204, %v223, 0
        %332 = vmatprep.subr.mxu0 0.0
        %333 = vmatpush1.msra.mxu0 %v224
        %334 = vmatprep.subr.mxu0 0.0
        %335 = vmatpush1.msra.mxu0 %v225
        %336 = vmatprep.subr.mxu0 0.0
        %337 = vmatpush1.msra.mxu0 %v226
        %338 = vmatprep.subr.mxu0 0.0
        %339 = vmatpush1.msra.mxu0 %v227
        %340 = vmatprep.subr.mxu0 0.0
        %341 = vmatpush1.msra.mxu0 %v228
        %342 = vmatprep.subr.mxu0 0.0
        %343 = vmatpush1.msra.mxu0 %v229
        %344 = vmatprep.subr.mxu0 0.0
        %345 = vmatpush1.msra.mxu0 %v230
        %346 = vmatprep.subr.mxu0 0.0
        %347 = vmatpush1.msra.mxu0 %v231
        %348 = vmatprep.subr.mxu0 0.0
        %349 = vmatpush1.msra.mxu0 %v232
        %350 = vmatprep.subr.mxu0 0.0
        %351 = vmatpush1.msra.mxu0 0.0
        %352 = vmatprep.subr.mxu0 0.0
        %353 = vmatpush1.msra.mxu0 0.0
        %354 = vmatprep.subr.mxu0 0.0
        %355 = vmatpush1.msra.mxu0 0.0
        %356 = vmatprep.subr.mxu0 0.0
        %357 = vmatpush1.msra.mxu0 0.0
        %358 = vmatprep.subr.mxu0 0.0
        %359 = vmatpush1.msra.mxu0 0.0
        %360 = vmatprep.subr.mxu0 0.0
        %361 = vmatpush1.msra.mxu0 0.0
        %362 = vmatprep.subr.mxu0 0.0
        %363 = vmatpush1.msra.mxu0 0.0
        %364 = vmatprep.subr.mxu0 0.0
        %365 = vmatpush1.msra.mxu0 0.0
        %366 = vmatprep.subr.mxu0 0.0
        %367 = vmatpush1.msra.mxu0 0.0
        %368 = vmatprep.subr.mxu0 0.0
        %369 = vmatpush1.msra.mxu0 0.0
        %370 = vmatprep.subr.mxu0 0.0
        %371 = vmatpush1.msra.mxu0 0.0
        %372 = vmatprep.subr.mxu0 0.0
        %373 = vmatpush1.msra.mxu0 0.0
        %374 = vmatprep.subr.mxu0 0.0
        %375 = vmatpush1.msra.mxu0 0.0
        %376 = vmatprep.subr.mxu0 0.0
        %377 = vmatpush1.msra.mxu0 0.0
        %378 = vmatprep.subr.mxu0 0.0
        %379 = vmatpush1.msra.mxu0 0.0
        %380 = vmatprep.subr.mxu0 0.0
        %381 = vmatpush1.msra.mxu0 0.0
        %382 = vmatprep.subr.mxu0 0.0
        %383 = vmatpush1.msra.mxu0 0.0
        %384 = vmatprep.subr.mxu0 0.0
        %385 = vmatpush1.msra.mxu0 0.0
        %386 = vmatprep.subr.mxu0 0.0
        %387 = vmatpush1.msra.mxu0 0.0
        %388 = vmatprep.subr.mxu0 0.0
        %389 = vmatpush1.msra.mxu0 0.0
        %390 = vmatprep.subr.mxu0 0.0
        %391 = vmatpush1.msra.mxu0 0.0
        %392 = vmatprep.subr.mxu0 0.0
        %393 = vmatpush1.msra.mxu0 0.0
        %394 = vmatprep.subr.mxu0 0.0
        %395 = vmatpush1.msra.mxu0 0.0
        %396 = vmatprep.mubr.f32.mxu0 0.0
        %397 = vmatmul.mubr.f32.gmra.mrb[0].mxu0 %v327
        %v398 = vpop.f32.mrb[0].mxu0
        %v399 = vadd.f32 %v318, %v398
        %v400 = vpop.f32.mrb[0].mxu0
        %401 = vmatprep.mubr.f32.mxu0 0.0
        %402 = vmatmul.mubr.f32.gmra.mrb[0].mxu0 %v330
        %v403 = vpop.f32.mrb[0].mxu0
        %v404 = vadd.f32 %v323, %v403
        %v405 = vpop.f32.mrb[0].mxu0
        %406 = vdwg.mxu0
        %v407 = vld [vmem:[#allocation2 + $0x2] sm:$0xff]
        %v408 = vld [vmem:[#allocation2 + $0xa] sm:$0xff]
        %s409 = scalar_lea.vmem [#allocation6], 144
        %v410 = vld [vmem:[%s409] sm:$0xff]
        %v411 = vld [vmem:[%s409 + $0x8] sm:$0xff]
        %v412 = vld [vmem:[%s409 + $0x10] sm:$0xff]
        %v413 = vld [vmem:[%s409 + $0x18] sm:$0xff]
        %v414 = vld [vmem:[%s409 + $0x20] sm:$0xff]
        %v415 = vld [vmem:[%s409 + $0x28] sm:$0xff]
        %v416 = vld [vmem:[%s409 + $0x30] sm:$0xff]
        %v417 = vld [vmem:[%s409 + $0x38] sm:$0xff]
        %v418 = vld [vmem:[%s409 + $0x40] sm:$0xff]
        %v420 = vsel %vm204, %v407, 0
        %v423 = vsel %vm204, %v408, 0
        %425 = vmatprep.subr.mxu0 0.0
        %426 = vmatpush1.msra.mxu0 %v410
        %427 = vmatprep.subr.mxu0 0.0
        %428 = vmatpush1.msra.mxu0 %v411
        %429 = vmatprep.subr.mxu0 0.0
        %430 = vmatpush1.msra.mxu0 %v412
        %431 = vmatprep.subr.mxu0 0.0
        %432 = vmatpush1.msra.mxu0 %v413
        %433 = vmatprep.subr.mxu0 0.0
        %434 = vmatpush1.msra.mxu0 %v414
        %435 = vmatprep.subr.mxu0 0.0
        %436 = vmatpush1.msra.mxu0 %v415
        %437 = vmatprep.subr.mxu0 0.0
        %438 = vmatpush1.msra.mxu0 %v416
        %439 = vmatprep.subr.mxu0 0.0
        %440 = vmatpush1.msra.mxu0 %v417
        %441 = vmatprep.subr.mxu0 0.0
        %442 = vmatpush1.msra.mxu0 %v418
        %443 = vmatprep.subr.mxu0 0.0
        %444 = vmatpush1.msra.mxu0 0.0
        %445 = vmatprep.subr.mxu0 0.0
        %446 = vmatpush1.msra.mxu0 0.0
        %447 = vmatprep.subr.mxu0 0.0
        %448 = vmatpush1.msra.mxu0 0.0
        %449 = vmatprep.subr.mxu0 0.0
        %450 = vmatpush1.msra.mxu0 0.0
        %451 = vmatprep.subr.mxu0 0.0
        %452 = vmatpush1.msra.mxu0 0.0
        %453 = vmatprep.subr.mxu0 0.0
        %454 = vmatpush1.msra.mxu0 0.0
        %455 = vmatprep.subr.mxu0 0.0
        %456 = vmatpush1.msra.mxu0 0.0
        %457 = vmatprep.subr.mxu0 0.0
        %458 = vmatpush1.msra.mxu0 0.0
        %459 = vmatprep.subr.mxu0 0.0
        %460 = vmatpush1.msra.mxu0 0.0
        %461 = vmatprep.subr.mxu0 0.0
        %462 = vmatpush1.msra.mxu0 0.0
        %463 = vmatprep.subr.mxu0 0.0
        %464 = vmatpush1.msra.mxu0 0.0
        %465 = vmatprep.subr.mxu0 0.0
        %466 = vmatpush1.msra.mxu0 0.0
        %467 = vmatprep.subr.mxu0 0.0
        %468 = vmatpush1.msra.mxu0 0.0
        %469 = vmatprep.subr.mxu0 0.0
        %470 = vmatpush1.msra.mxu0 0.0
        %471 = vmatprep.subr.mxu0 0.0
        %472 = vmatpush1.msra.mxu0 0.0
        %473 = vmatprep.subr.mxu0 0.0
        %474 = vmatpush1.msra.mxu0 0.0
        %475 = vmatprep.subr.mxu0 0.0
        %476 = vmatpush1.msra.mxu0 0.0
        %477 = vmatprep.subr.mxu0 0.0
        %478 = vmatpush1.msra.mxu0 0.0
        %479 = vmatprep.subr.mxu0 0.0
        %480 = vmatpush1.msra.mxu0 0.0
        %481 = vmatprep.subr.mxu0 0.0
        %482 = vmatpush1.msra.mxu0 0.0
        %483 = vmatprep.subr.mxu0 0.0
        %484 = vmatpush1.msra.mxu0 0.0
        %485 = vmatprep.subr.mxu0 0.0
        %486 = vmatpush1.msra.mxu0 0.0
        %487 = vmatprep.subr.mxu0 0.0
        %488 = vmatpush1.msra.mxu0 0.0
        %489 = vmatprep.mubr.f32.mxu0 0.0
        %490 = vmatmul.mubr.f32.gmra.mrb[0].mxu0 %v420
        %v491 = vpop.f32.mrb[0].mxu0
        %v492 = vadd.f32 0.0, %v491
        %v493 = vpop.f32.mrb[0].mxu0
        %494 = vmatprep.mubr.f32.mxu0 0.0
        %495 = vmatmul.mubr.f32.gmra.mrb[0].mxu0 %v423
        %v496 = vpop.f32.mrb[0].mxu0
        %v497 = vadd.f32 0.0, %v496
        %v498 = vpop.f32.mrb[0].mxu0
        %499 = vdwg.mxu0
        %v500 = vadd.f32 %v399, %v492
        %v501 = vadd.f32 %v404, %v497
        %v502 = vld [vmem:[%s2] sm:$0x1]
        %v504 = vlaneseq
        %v505 = vshrl.u32 %v504, 7
        %v506 = vsub.s32 0, %v505
        %v507 = vrot.slane %v502, %v506
        %v509 = vadd.f32 %v500, %v507
        %v510 = vadd.f32 %v501, %v507
        %v511 = vmax.f32 %v509, 0.0
        %v512 = vmax.f32 %v510, 0.0
        %513 = vst [vmem:[%s203] sm:$0xff] %v511
        %514 = vst [vmem:[%s203 + $0x8] sm:$0xff] %v512
        %s515 = sand.u32 %s97, 1
        %s516 = scalar_lea.sflag [#allocation5], %s515
        %s517 = sand.u32 %s97, 1
        %s518 = smul.addr %s517, 16
        %s519 = scalar_lea.vmem [#allocation8], %s518
        // Predicated region
        $region41: #{tpu_custom_call.1} parent=31 // pred_check
          %p520 = pneg %p107
        $region42: #{tpu_custom_call.1} parent=31 // pred_check_branch
          %522 = sbr.rel (%p520) target = $region44
        $region43: #{tpu_custom_call.1} parent=31 // pred_region
          %s524 = ssub.s32 256, 256
          %525 = vsyncadd %s516, %s524
          %s526 = smul.addr %s21, 2
          %s527 = smul.addr %s526, 128
          %s528 = scalar_lea.hbm %s3, %s527
          %s529 = sshll.u32 %s519, 4
          %s530 = int_to_ptr.vmem [resolvable:$true] %s529
          %535 = dma.vmem_to_hbm [thread:$0]  %s530, 256, %s528, %s516, 128, 128, 8
        $region44: #{tpu_custom_call.1} parent=31 // pred_fallthru
          _
      $region32: #{tpu_custom_call.1} parent=5 // pred_fallthru
        _
      %p536 = scmp.le.s32.totalorder 2, %s16
      // Predicated region
      $region45: #{tpu_custom_call.1} parent=5 // pred_check
        %p537 = pneg %p536
      $region46: #{tpu_custom_call.1} parent=5 // pred_check_branch
        %539 = sbr.rel (%p537) target = $region48
      $region47: #{tpu_custom_call.1} parent=5 // pred_region
        %s540 = ssub.s32 %s16, 2
        // Predicated region
        $region49: #{tpu_custom_call.1} parent=47 // pred_check
          %p541 = pneg %p113
        $region50: #{tpu_custom_call.1} parent=47 // pred_check_branch
          %543 = sbr.rel (%p541) target = $region52
        $region51: #{tpu_custom_call.1} parent=47 // pred_region
          %s544 = sand.u32 %s98, 1
          %s545 = scalar_lea.sflag [#allocation5], %s544
          %s546 = sand.u32 %s98, 1
          %s547 = smul.addr %s546, 16
          %s548 = scalar_lea.vmem [#allocation8], %s547
          %549 = dma.done %s545, 256
        $region52: #{tpu_custom_call.1} parent=47 // pred_fallthru
          _
      $region48: #{tpu_custom_call.1} parent=5 // pred_fallthru
        _
    $region6: #{tpu_custom_call.1} parent=1 // loop_footer
      %s20 = sadd.s32 1, %s16
    $region7: #{tpu_custom_call.1} parent=1 // loop_footer_branch
      %15 = sbr.rel target = $region3
    $region8: #{tpu_custom_call.1} parent=1 // loop_exit
      _
    %550 = vsyncpa [#allocation4], 1
    %s551 = scalar_lea.sflag [#allocation4], 1
    %552 = vsyncpa %s551, 1
    %553 = vsyncpa [#allocation7], 1
    %554 = vsyncpa [#allocation5], 1
    %s555 = scalar_lea.sflag [#allocation5], 1
    %556 = vsyncpa %s555, 1

</llo_original>
